<compile_context>
chip_gen: v5e
topology: v5e:2x2
jax: 0.10.0
libtpu: 0.0.40
codegen_flags: <defaults>
</compile_context>

<pallas_src>
import math

import jax
import jax.numpy as jnp
from jax.experimental import pallas as pl
from jax.experimental.pallas import tpu as pltpu


def _round_up(x, m):
    return (x + m - 1) // m * m


def _cdiv(a, b):
    return -(-a // b)


def location_layer(attention_weights_cat, conv_weight, dense_weight, *,
                   block_time=1024, compute_dtype=jnp.bfloat16):
    """LocationLayer forward.

    Args:
      attention_weights_cat: [B, 2, T] input (PyTorch layout).
      conv_weight:  [n_filters, 2, K]          Conv1d weight (OIW layout), bias-free.
      dense_weight: [attention_dim, n_filters] Linear weight ([out, in]), bias-free.
      block_time:   rows (time steps) per grid step.
      compute_dtype: MXU operand dtype (bf16 recommended; f32 accumulation is kept).
    Returns:
      [B, T, attention_dim], same dtype as the input.
    """
    x = attention_weights_cat
    B, C, T = x.shape
    F, C2, K = conv_weight.shape
    D, F2 = dense_weight.shape
    assert C == 2 and C2 == 2 and F2 == F and K % 2 == 1
    pad = (K - 1) // 2

    # ---- time-tile selection ----
    t_tile = min(block_time, _round_up(T, 8))
    if B * _cdiv(T, t_tile) < 2:           # keep both v7x TensorCores busy on tiny grids
        t_tile = max(8, _round_up(_cdiv(T, 2), 8))
    t_pad = _round_up(T, t_tile)
    n_t = t_pad // t_tile

    ckp = _round_up(2 * K, 8)              # padded contraction length (64 for K=31)

    # ---- host-side prep (tiny tensors only) ----
    # Unfold (im2col) the 2-channel input into a lane-dense [B, t_pad, ckp] slab.
    # Column order is 2*k + c, matching the fused-weight row order below.
    x_t = jnp.transpose(x, (0, 2, 1)).astype(jnp.float32)            # [B, T, 2]
    x_p = jnp.pad(x_t, ((0, 0), (pad, pad + (t_pad - T)), (0, 0)))   # [B, t_pad + K - 1, 2]
    taps = [x_p[:, k:k + t_pad, :] for k in range(K)]                # K x [B, t_pad, 2]
    unf = jnp.concatenate(taps, axis=-1)                             # [B, t_pad, 2K]
    unf = jnp.pad(unf, ((0, 0), (0, 0), (0, ckp - 2 * K)))           # zero cols: exact no-op
    unf = unf.astype(compute_dtype)

    # Fold Conv1d and Linear (both bias-free) into one matrix:
    #   y[t, d] = sum_{k, c} x_padded[t + k, c] * W_fused[2k + c, d]
    wc_unf = jnp.transpose(conv_weight.astype(jnp.float32), (2, 1, 0)).reshape(2 * K, F)
    w_fused = jnp.dot(wc_unf, dense_weight.astype(jnp.float32).T,
                      precision=jax.lax.Precision.HIGHEST)            # [2K, D]
    w_fused = jnp.pad(w_fused, ((0, ckp - 2 * K), (0, 0))).astype(compute_dtype)

    def kernel(x_ref, w_ref, o_ref):
        # x_ref: (1, t_tile, ckp)  unfolded input tile (bf16)
        # w_ref: (ckp, D)          fused conv+dense weight, resident in VMEM (bf16)
        # o_ref: (1, t_tile, D)    lane-dense output tile
        y = jnp.dot(x_ref[0, :, :], w_ref[...], preferred_element_type=jnp.float32)
        o_ref[0, :, :] = y.astype(o_ref.dtype)

    itemsize_in = jnp.dtype(compute_dtype).itemsize
    itemsize_out = jnp.dtype(x.dtype).itemsize
    cost = pl.CostEstimate(
        flops=2 * B * t_pad * ckp * D,
        transcendentals=0,
        bytes_accessed=(B * t_pad * ckp + ckp * D) * itemsize_in + B * T * D * itemsize_out,
    )

    out = pl.pallas_call(
        kernel,
        out_shape=jax.ShapeDtypeStruct((B, T, D), x.dtype),   # direct: no host-side slice
        grid=(B, n_t),
        in_specs=[
            pl.BlockSpec((1, t_tile, ckp), lambda b, t: (b, t, 0)),
            # Constant index_map -> fused weight stays resident in VMEM across the grid.
            pl.BlockSpec((ckp, D), lambda b, t: (0, 0)),
        ],
        out_specs=pl.BlockSpec((1, t_tile, D), lambda b, t: (b, t, 0)),
        compiler_params=pltpu.CompilerParams(
            dimension_semantics=("parallel", "parallel")),
        cost_estimate=cost,
    )(unf, w_fused)
    return out


def _reference(x, conv_weight, dense_weight):
    """Pure-JAX reference matching the PyTorch module (f32)."""
    K = conv_weight.shape[-1]
    pad = (K - 1) // 2
    conv = jax.lax.conv_general_dilated(
        x.astype(jnp.float32), conv_weight.astype(jnp.float32),
        window_strides=(1,), padding=[(pad, pad)],
        dimension_numbers=("NCH", "OIH", "NCH"),
        precision=jax.lax.Precision.HIGHEST)                 # [B, F, T]
    conv = jnp.transpose(conv, (0, 2, 1))                     # [B, T, F]
    return jnp.matmul(conv, dense_weight.astype(jnp.float32).T,
                      precision=jax.lax.Precision.HIGHEST)    # [B, T, D]


if __name__ == "__main__":
    # Small shapes consistent with LocationLayer usage.
    B, T = 2, 64
    n_filters, kernel_size, attention_dim = 32, 31, 128

    key = jax.random.PRNGKey(0)
    kx, kc, kd = jax.random.split(key, 3)

    x = jax.random.normal(kx, (B, 2, T), dtype=jnp.float32)

    # Xavier-uniform-ish init mirroring ConvNorm (gain=1) / LinearNorm (gain('tanh')=5/3).
    bound_c = math.sqrt(6.0 / (2 * kernel_size + n_filters * kernel_size))
    conv_weight = jax.random.uniform(kc, (n_filters, 2, kernel_size), jnp.float32,
                                     -bound_c, bound_c)
    bound_d = (5.0 / 3.0) * math.sqrt(6.0 / (n_filters + attention_dim))
    dense_weight = jax.random.uniform(kd, (attention_dim, n_filters), jnp.float32,
                                      -bound_d, bound_d)

    y = location_layer(x, conv_weight, dense_weight)
    y = jax.block_until_ready(y)

    y_ref = _reference(x, conv_weight, dense_weight)
    assert y.shape == (B, T, attention_dim) and y.dtype == x.dtype
    # Tolerance accounts for bf16 MXU operands (f32 accumulation) vs the f32 reference.
    assert jnp.allclose(y, y_ref, atol=2e-2, rtol=2e-2), "mismatch vs reference"

    print("KERNEL_OK")
</pallas_src>

<mosaic_0001>
module attributes {stable_mosaic.version = 11 : i64} {
  func.func @kernel(%arg0: i32, %arg1: i32, %arg2: memref<1x64x64xbf16, #tpu.memory_space<vmem>>, %arg3: memref<64x128xbf16, #tpu.memory_space<vmem>>, %arg4: memref<1x64x128xf32, #tpu.memory_space<vmem>>) attributes {dimension_semantics = [#tpu.dimension_semantics<parallel>, #tpu.dimension_semantics<parallel>], iteration_bounds = array<i64: 2, 1>, scalar_prefetch = 0 : i64, scratch_operands = 0 : i64, tpu.core_type = #tpu.core_type<tc>, window_params = [{transform_indices = @transform_0, window_bounds = array<i64: 1, 64, 64>}, {pipeline_mode = #tpu.pipeline_mode<synchronous>, transform_indices = @transform_1, window_bounds = array<i64: 64, 128>}, {transform_indices = @transform_2, window_bounds = array<i64: 1, 64, 128>}]} {
    %c0 = arith.constant 0 : index
    %c0_0 = arith.constant 0 : index
    %c0_1 = arith.constant 0 : index
    %0 = vector.load %arg2[%c0, %c0_0, %c0_1] : memref<1x64x64xbf16, #tpu.memory_space<vmem>>, vector<1x64x64xbf16>
    %1 = vector.shape_cast %0 : vector<1x64x64xbf16> to vector<64x64xbf16>
    %c0_2 = arith.constant 0 : index
    %c0_3 = arith.constant 0 : index
    %2 = vector.load %arg3[%c0_2, %c0_3] : memref<64x128xbf16, #tpu.memory_space<vmem>>, vector<64x128xbf16>
    %cst = arith.constant dense<0.000000e+00> : vector<64x128xf32>
    %3 = tpu.matmul %1, %2, %cst {dimension_numbers = #tpu.dot_dimension_numbers<[1], [0], [0], [1], [0, 0, 1, 1], [], []>} : vector<64x64xbf16>, vector<64x128xbf16>, vector<64x128xf32> -> vector<64x128xf32>
    %c0_4 = arith.constant 0 : index
    %c0_5 = arith.constant 0 : index
    %c0_6 = arith.constant 0 : index
    %4 = vector.load %arg4[%c0_4, %c0_5, %c0_6] : memref<1x64x128xf32, #tpu.memory_space<vmem>>, vector<1x64x128xf32>
    %5 = vector.shape_cast %4 : vector<1x64x128xf32> to vector<64x128xf32>
    %6 = vector.shape_cast %3 : vector<64x128xf32> to vector<1x64x128xf32>
    tpu.vector_store %arg4[%c0_4, %c0_5, %c0_6], %6 {strides = array<i32>} : memref<1x64x128xf32, #tpu.memory_space<vmem>>, vector<1x64x128xf32>,
    return
  }
  func.func @transform_0(%arg0: i32, %arg1: i32) -> (i32, i32, i32) {
    %c0_i32 = arith.constant 0 : i32
    %c0_i32_0 = arith.constant 0 : i32
    return %arg0, %arg1, %c0_i32 : i32, i32, i32
  }
  func.func @transform_1(%arg0: i32, %arg1: i32) -> (i32, i32) {
    %c0_i32 = arith.constant 0 : i32
    %c0_i32_0 = arith.constant 0 : i32
    %c0_i32_1 = arith.constant 0 : i32
    return %c0_i32, %c0_i32_0 : i32, i32
  }
  func.func @transform_2(%arg0: i32, %arg1: i32) -> (i32, i32, i32) {
    %c0_i32 = arith.constant 0 : i32
    %c0_i32_0 = arith.constant 0 : i32
    return %arg0, %arg1, %c0_i32 : i32, i32, i32
  }
}

</mosaic_0001>

<llo_original>
// kernel: tpu_custom_call.1
$region0: #{tpu_custom_call.1}
  #allocation0 [shape = 'u32[]', space=smem, size = 0x4, offset = 0x4, fixed_abs, tag = 'smem constant byte address 0x4 - core index']
  #allocation1 [shape = 'u32[72,128]{1,0:T(1,128)}', space=vmem, size = 0x9000, scoped, tag = 'internal scratch']
  %s0 = inlined_call_operand.hbm [shape: bf16[2,64,64], index: 0, kind: input, shape index: {}]
  %s1 = inlined_call_operand.hbm [shape: bf16[64,128], index: 1, kind: input, shape index: {}]
  %s2 = inlined_call_operand.hbm [shape: f32[2,64,128], index: 2, kind: output, shape index: {}]
  %s3 = sld [smem:[#allocation0]]
  $region49: #{tpu_custom_call.1} parent=0
    _
  %s5 = ssub.s32 1, %s3
  %s6 = scalar_select 0, %s5, %s3
  $region1: #{tpu_custom_call.1} parent=0
    #allocation2 [shape = 'u8[32768]{0}', space=vmem, size = 0x8000, scoped, tag = 'input window, operand 0']
    #allocation3 [shape = 's32[2]{0}', space=sflag, size = 0x8, scoped, tag = 'scoped memory for tpu_custom_call.1']
    #allocation4 [shape = 's32[2]{0}', space=sflag, size = 0x8, scoped, tag = 'scoped memory for tpu_custom_call.1']
    #allocation5 [shape = 'u8[16384]{0}', space=vmem, size = 0x4000, scoped, tag = 'input window, operand 1, single buffered']
    #allocation6 [shape = 's32[1]{0}', space=sflag, size = 0x4, scoped, tag = 'scoped memory for tpu_custom_call.1']
    #allocation7 [shape = 'u8[65536]{0}', space=vmem, size = 0x10000, scoped, tag = 'output window, operand 0']
    %7 = vsyncpa [#allocation3], 0
    %s8 = scalar_lea.sflag [#allocation3], 1
    %9 = vsyncpa %s8, 0
    %10 = vsyncpa [#allocation6], 0
    %11 = vsyncpa [#allocation4], 0
    %s12 = scalar_lea.sflag [#allocation4], 1
    %13 = vsyncpa %s12, 0
    loop: start=0, step=1, limit=4
    $region2: #{tpu_custom_call.1} parent=1 // loop_pre_header
      _
    $region3: #{tpu_custom_call.1} parent=1 // loop_header
      %s15 = sphi 0, %s19
      %p16 = scmp.ge.s32.totalorder %s15, 4
      %s22 = sphi 0, %s34
      %s23 = sphi 0, %s30
      %s24 = sphi 0, %s22
      %s25 = sphi 0, %s23
      %s26 = sphi 0, %s24
      %s27 = sphi 0, %s25
      %s39 = sphi 0, %s41
      %s42 = sphi 0, %s39
      %s43 = sphi 0, %s42
      %s59 = sphi 0, %s43
      %s63 = sphi 0, %s63
      %s65 = sphi 0, %s63
      %s66 = sphi 0, %s65
      %s80 = sphi 0, %s66
      %s88 = sphi 0, %s90
      %s91 = sphi 0, %s88
      %s92 = sphi 0, %s91
      %s108 = sphi 0, %s92
    $region4: #{tpu_custom_call.1} parent=1 // loop_header_branch
      %18 = sbr.rel (%p16) target = $region8
    $region5: #{tpu_custom_call.1} parent=1 // loop_body
      %s20 = ssub.s32 %s15, 1
      %s21 = ssub.s32 %s15, 2
      %s28 = sadd.s32 1, %s23
      %p29 = scmp.ge.s32.totalorder %s28, 1
      %s30 = scalar_select %p29, 0, %s28
      %s31 = sadd.s32 1, %s22
      %s32 = scalar_select %p29, %s31, %s22
      %p33 = scmp.ge.s32.totalorder %s32, 2
      %s34 = scalar_select %p33, 0, %s32
      %s35 = ssub.s32 %s22, %s34
      %s36 = ssub.s32 %s23, %s30
      %s37 = sor.u32 %s35, %s36
      %p38 = scmp.eq.s32.totalorder %s37, 0
      %s40 = sadd.s32 %s39, 1
      %s41 = scalar_select %p38, %s39, %s40
      %p44 = pneg %p38
      %p45 = scmp.eq.s32.totalorder %s15, 1
      %p46 = por %p44, %p45
      %p47 = scmp.ne.s32.totalorder %s39, %s42
      %p48 = scmp.eq.s32.totalorder %s15, 0
      %p49 = por %p47, %p48
      %p50 = scmp.ne.s32.totalorder %s39, %s42
      %p51 = scmp.eq.s32.totalorder %s20, 1
      %p52 = por %p50, %p51
      %p53 = scmp.ne.s32.totalorder %s42, %s43
      %p54 = scmp.eq.s32.totalorder %s20, 0
      %p55 = por %p53, %p54
      %p56 = scmp.ne.s32.totalorder %s42, %s43
      %p57 = scmp.eq.s32.totalorder %s21, 1
      %p58 = por %p56, %p57
      %p60 = scmp.ne.s32.totalorder %s43, %s59
      %p61 = scmp.eq.s32.totalorder %s21, 0
      %p62 = por %p60, %p61
      %s64 = sadd.s32 %s63, 1
      %p67 = scmp.eq.s32.totalorder %s15, 1
      %p68 = scmp.ne.s32.totalorder %s63, %s65
      %p69 = scmp.eq.s32.totalorder %s15, 0
      %p70 = por %p68, %p69
      %p71 = scmp.ne.s32.totalorder %s63, %s65
      %p72 = scmp.eq.s32.totalorder %s20, 1
      %p73 = por %p71, %p72
      %p74 = scmp.ne.s32.totalorder %s65, %s66
      %p75 = scmp.eq.s32.totalorder %s20, 0
      %p76 = por %p74, %p75
      %p77 = scmp.ne.s32.totalorder %s65, %s66
      %p78 = scmp.eq.s32.totalorder %s21, 1
      %p79 = por %p77, %p78
      %p81 = scmp.ne.s32.totalorder %s66, %s80
      %p82 = scmp.eq.s32.totalorder %s21, 0
      %p83 = por %p81, %p82
      %s84 = ssub.s32 %s22, %s34
      %s85 = ssub.s32 %s23, %s30
      %s86 = sor.u32 %s84, %s85
      %p87 = scmp.eq.s32.totalorder %s86, 0
      %s89 = sadd.s32 %s88, 1
      %s90 = scalar_select %p87, %s88, %s89
      %p93 = pneg %p87
      %p94 = scmp.eq.s32.totalorder %s15, 1
      %p95 = por %p93, %p94
      %p96 = scmp.ne.s32.totalorder %s88, %s91
      %p97 = scmp.eq.s32.totalorder %s15, 0
      %p98 = por %p96, %p97
      %p99 = scmp.ne.s32.totalorder %s88, %s91
      %p100 = scmp.eq.s32.totalorder %s20, 1
      %p101 = por %p99, %p100
      %p102 = scmp.ne.s32.totalorder %s91, %s92
      %p103 = scmp.eq.s32.totalorder %s20, 0
      %p104 = por %p102, %p103
      %p105 = scmp.ne.s32.totalorder %s91, %s92
      %p106 = scmp.eq.s32.totalorder %s21, 1
      %p107 = por %p105, %p106
      %p109 = scmp.ne.s32.totalorder %s92, %s108
      %p110 = scmp.eq.s32.totalorder %s21, 0
      %p111 = por %p109, %p110
      %p112 = scmp.le.s32.totalorder 1, %s15
      %p113 = scmp.lt.s32.totalorder %s15, 3
      %p114 = pnand %p112, %p113
      %p115 = pneg %p114
      // Predicated region
      $region9: #{tpu_custom_call.1} parent=5 // pred_check
        _
      $region10: #{tpu_custom_call.1} parent=5 // pred_check_branch
        %117 = sbr.rel (%p114) target = $region12
      $region11: #{tpu_custom_call.1} parent=5 // pred_region
        %s118 = ssub.s32 %s15, 1
        // Predicated region
        $region13: #{tpu_custom_call.1} parent=11 // pred_check
          %p119 = pneg %p76
        $region14: #{tpu_custom_call.1} parent=11 // pred_check_branch
          %121 = sbr.rel (%p119) target = $region16
        $region15: #{tpu_custom_call.1} parent=11 // pred_region
          %123 = vsyncadd [#allocation6], 0
          %s124 = sshll.u32 %s1, 4
          %s125 = int_to_ptr.hbm [resolvable:$true] %s124
          %s126 = sshll.u32 [#allocation5], 4
          %s127 = int_to_ptr.vmem [resolvable:$true] %s126
          %132 = dma.hbm_to_vmem [thread:$0]  %s125, 512, %s127, [#allocation6], 64, 64, 4
        $region16: #{tpu_custom_call.1} parent=11 // pred_fallthru
          _
      $region12: #{tpu_custom_call.1} parent=5 // pred_fallthru
        _
      %p133 = scmp.lt.s32.totalorder %s15, 2
      // Predicated region
      $region17: #{tpu_custom_call.1} parent=5 // pred_check
        %p134 = pneg %p133
      $region18: #{tpu_custom_call.1} parent=5 // pred_check_branch
        %136 = sbr.rel (%p134) target = $region20
      $region19: #{tpu_custom_call.1} parent=5 // pred_region
        // Predicated region
        $region21: #{tpu_custom_call.1} parent=19 // pred_check
          %p137 = pneg %p49
        $region22: #{tpu_custom_call.1} parent=19 // pred_check_branch
          %139 = sbr.rel (%p137) target = $region24
        $region23: #{tpu_custom_call.1} parent=19 // pred_region
          %s140 = sand.u32 %s39, 1
          %s141 = scalar_lea.sflag [#allocation3], %s140
          %s142 = sand.u32 %s39, 1
          %s143 = smul.addr %s142, 32
          %s144 = scalar_lea.vmem [#allocation2], %s143
          %s145 = smul.u32 8, %s23
          %147 = vsyncadd %s141, 0
          %s148 = smul.addr %s22, 8
          %s149 = sadd.s32 %s145, %s148
          %s150 = smul.addr %s149, 4
          %s151 = scalar_lea.hbm %s0, %s150
          %s152 = sshll.u32 %s151, 4
          %s153 = int_to_ptr.hbm [resolvable:$true] %s152
          %s154 = sshll.u32 %s144, 4
          %s155 = int_to_ptr.vmem [resolvable:$true] %s154
          %160 = dma.hbm_to_vmem [thread:$0]  %s153, 512, %s155, %s141, 64, 64, 4
        $region24: #{tpu_custom_call.1} parent=19 // pred_fallthru
          _
      $region20: #{tpu_custom_call.1} parent=5 // pred_fallthru
        _
      %p161 = scmp.le.s32.totalorder 1, %s15
      %p162 = scmp.lt.s32.totalorder %s15, 3
      %p163 = pnand %p161, %p162
      %p164 = pneg %p163
      // Predicated region
      $region25: #{tpu_custom_call.1} parent=5 // pred_check
        _
      $region26: #{tpu_custom_call.1} parent=5 // pred_check_branch
        %166 = sbr.rel (%p163) target = $region28
      $region27: #{tpu_custom_call.1} parent=5 // pred_region
        %s167 = ssub.s32 %s15, 1
        %s168 = sand.u32 %s42, 1
        %s169 = scalar_lea.sflag [#allocation3], %s168
        %s170 = sand.u32 %s42, 1
        %s171 = smul.addr %s170, 32
        %s172 = scalar_lea.vmem [#allocation2], %s171
        // Predicated region
        $region29: #{tpu_custom_call.1} parent=27 // pred_check
          %p173 = pneg %p55
        $region30: #{tpu_custom_call.1} parent=27 // pred_check_branch
          %175 = sbr.rel (%p173) target = $region32
        $region31: #{tpu_custom_call.1} parent=27 // pred_region
          %177 = dma.done %s169, 512
        $region32: #{tpu_custom_call.1} parent=27 // pred_fallthru
          _
        // Predicated region
        $region33: #{tpu_custom_call.1} parent=27 // pred_check
          %p178 = pneg %p76
        $region34: #{tpu_custom_call.1} parent=27 // pred_check_branch
          %180 = sbr.rel (%p178) target = $region36
        $region35: #{tpu_custom_call.1} parent=27 // pred_region
          %182 = dma.done [#allocation6], 512
        $region36: #{tpu_custom_call.1} parent=27 // pred_fallthru
          _
        %s183 = sand.u32 %s42, 1
        %s184 = scalar_lea.sflag [#allocation3], %s183
        %s185 = sand.u32 %s42, 1
        %s186 = smul.addr %s185, 32
        %s187 = scalar_lea.vmem [#allocation2], %s186
        %p188 = pneg %p55
        %p189 = pneg %p52
        %p190 = pneg %p76
        %p191 = pneg %p73
        %p192 = pneg %p104
        %p193 = pneg %p101
        %s194 = sand.u32 %s91, 1
        %s195 = scalar_lea.sflag [#allocation4], %s194
        %s196 = sand.u32 %s91, 1
        %s197 = smul.addr %s196, 64
        %s198 = scalar_lea.vmem [#allocation7], %s197
        %s199 = smul.u32 8, %s25
        %s200 = smul.u32 8, %s25
        %v202 = vld [vmem:[%s172] sm:$0xf]
        %v203 = vld [vmem:[%s172 + $0x4] sm:$0xf]
        %v204 = vld [vmem:[%s172 + $0x8] sm:$0xf]
        %v205 = vld [vmem:[%s172 + $0xc] sm:$0xf]
        %v206 = vld [vmem:[%s172 + $0x10] sm:$0xf]
        %v207 = vld [vmem:[%s172 + $0x14] sm:$0xf]
        %v208 = vld [vmem:[%s172 + $0x18] sm:$0xf]
        %v209 = vld [vmem:[%s172 + $0x1c] sm:$0xf]
        %v210 = vld [vmem:[#allocation5] sm:$0xf]
        %v211 = vld [vmem:[#allocation5 + $0x4] sm:$0xf]
        %v212 = vld [vmem:[#allocation5 + $0x8] sm:$0xf]
        %v213 = vld [vmem:[#allocation5 + $0xc] sm:$0xf]
        %v214 = vld [vmem:[#allocation5 + $0x10] sm:$0xf]
        %v215 = vld [vmem:[#allocation5 + $0x14] sm:$0xf]
        %v216 = vld [vmem:[#allocation5 + $0x18] sm:$0xf]
        %v217 = vld [vmem:[#allocation5 + $0x1c] sm:$0xf]
        %v226 = vunpack.c.l.b16 %v202
        %v227 = vunpack.c.l.b16 %v203
        %v228 = vunpack.c.l.b16 %v204
        %v229 = vunpack.c.l.b16 %v205
        %v230 = vunpack.c.l.b16 %v206
        %v231 = vunpack.c.l.b16 %v207
        %v232 = vunpack.c.l.b16 %v208
        %v233 = vunpack.c.l.b16 %v209
        %v234 = vpack.c.b16 %v227, %v226
        %v235 = vpack.c.b16 %v229, %v228
        %v236 = vpack.c.b16 %v231, %v230
        %v237 = vpack.c.b16 %v233, %v232
        %v246 = vunpack.c.l.b16 %v210
        %v247 = vunpack.c.l.b16 %v211
        %v248 = vunpack.c.l.b16 %v212
        %v249 = vunpack.c.l.b16 %v213
        %v250 = vunpack.c.l.b16 %v214
        %v251 = vunpack.c.l.b16 %v215
        %v252 = vunpack.c.l.b16 %v216
        %v253 = vunpack.c.l.b16 %v217
        %v254 = vpack.c.b16 %v247, %v246
        %v255 = vpack.c.b16 %v249, %v248
        %v256 = vpack.c.b16 %v251, %v250
        %v257 = vpack.c.b16 %v253, %v252
        %vm262 = vcmask 523264
        %v264 = vsel %vm262, %v234, 0
        %v267 = vsel %vm262, %v235, 0
        %v270 = vsel %vm262, %v236, 0
        %v273 = vsel %vm262, %v237, 0
        %275 = vmatpush.bf16.msra.mxu0 0
        %276 = vmatpush.bf16.msra.mxu0 0
        %277 = vmatpush.bf16.msra.mxu0 0
        %278 = vmatpush.bf16.msra.mxu0 0
        %279 = vmatpush.bf16.msra.mxu0 %v257
        %280 = vmatpush.bf16.msra.mxu0 %v256
        %281 = vmatpush.bf16.msra.mxu0 %v255
        %282 = vmatpush.bf16.msra.mxu0 %v254
        %283 = vmatmul.bf16.gmra.mxu0 %v264
        %v284 = vpop.f32.mrf.mxu0
        %v285 = vadd.f32 0.0, %v284
        %v286 = vpop.f32.mrf.mxu0
        %v287 = vadd.f32 0.0, %v286
        %288 = vmatmul.bf16.gmra.mxu0 %v267
        %v289 = vpop.f32.mrf.mxu0
        %v290 = vadd.f32 0.0, %v289
        %v291 = vpop.f32.mrf.mxu0
        %v292 = vadd.f32 0.0, %v291
        %293 = vmatmul.bf16.gmra.mxu0 %v270
        %v294 = vpop.f32.mrf.mxu0
        %v295 = vadd.f32 0.0, %v294
        %v296 = vpop.f32.mrf.mxu0
        %v297 = vadd.f32 0.0, %v296
        %298 = vmatmul.bf16.gmra.mxu0 %v273
        %v299 = vpop.f32.mrf.mxu0
        %v300 = vadd.f32 0.0, %v299
        %v301 = vpop.f32.mrf.mxu0
        %v302 = vadd.f32 0.0, %v301
        %303 = vdwg.mxu0
        %304 = vst [vmem:[%s198] sm:$0xff] %v285
        %305 = vst [vmem:[%s198 + $0x8] sm:$0xff] %v287
        %306 = vst [vmem:[%s198 + $0x10] sm:$0xff] %v290
        %307 = vst [vmem:[%s198 + $0x18] sm:$0xff] %v292
        %308 = vst [vmem:[%s198 + $0x20] sm:$0xff] %v295
        %309 = vst [vmem:[%s198 + $0x28] sm:$0xff] %v297
        %310 = vst [vmem:[%s198 + $0x30] sm:$0xff] %v300
        %311 = vst [vmem:[%s198 + $0x38] sm:$0xff] %v302
        %s312 = sand.u32 %s91, 1
        %s313 = scalar_lea.sflag [#allocation4], %s312
        %s314 = sand.u32 %s91, 1
        %s315 = smul.addr %s314, 64
        %s316 = scalar_lea.vmem [#allocation7], %s315
        // Predicated region
        $region37: #{tpu_custom_call.1} parent=27 // pred_check
          %p317 = pneg %p101
        $region38: #{tpu_custom_call.1} parent=27 // pred_check_branch
          %319 = sbr.rel (%p317) target = $region40
        $region39: #{tpu_custom_call.1} parent=27 // pred_region
          %s320 = smul.u32 8, %s25
          %322 = vsyncadd %s313, 0
          %s323 = smul.addr %s24, 8
          %s324 = sadd.s32 %s320, %s323
          %s325 = smul.addr %s324, 8
          %s326 = scalar_lea.hbm %s2, %s325
          %s327 = sshll.u32 %s316, 4
          %s328 = int_to_ptr.vmem [resolvable:$true] %s327
          %s329 = sshll.u32 %s326, 4
          %s330 = int_to_ptr.hbm [resolvable:$true] %s329
          %335 = dma.vmem_to_hbm [thread:$0]  %s328, 1024, %s330, %s313, 128, 128, 8
        $region40: #{tpu_custom_call.1} parent=27 // pred_fallthru
          _
      $region28: #{tpu_custom_call.1} parent=5 // pred_fallthru
        _
      %p336 = scmp.le.s32.totalorder 2, %s15
      // Predicated region
      $region41: #{tpu_custom_call.1} parent=5 // pred_check
        %p337 = pneg %p336
      $region42: #{tpu_custom_call.1} parent=5 // pred_check_branch
        %339 = sbr.rel (%p337) target = $region44
      $region43: #{tpu_custom_call.1} parent=5 // pred_region
        %s340 = ssub.s32 %s15, 2
        // Predicated region
        $region45: #{tpu_custom_call.1} parent=43 // pred_check
          %p341 = pneg %p107
        $region46: #{tpu_custom_call.1} parent=43 // pred_check_branch
          %343 = sbr.rel (%p341) target = $region48
        $region47: #{tpu_custom_call.1} parent=43 // pred_region
          %s344 = sand.u32 %s92, 1
          %s345 = scalar_lea.sflag [#allocation4], %s344
          %s346 = sand.u32 %s92, 1
          %s347 = smul.addr %s346, 64
          %s348 = scalar_lea.vmem [#allocation7], %s347
          %350 = dma.done %s345, 1024
        $region48: #{tpu_custom_call.1} parent=43 // pred_fallthru
          _
      $region44: #{tpu_custom_call.1} parent=5 // pred_fallthru
        _
    $region6: #{tpu_custom_call.1} parent=1 // loop_footer
      %s19 = sadd.s32 1, %s15
    $region7: #{tpu_custom_call.1} parent=1 // loop_footer_branch
      %14 = sbr.rel target = $region3
    $region8: #{tpu_custom_call.1} parent=1 // loop_exit
      _
    %351 = vsyncpa [#allocation3], 1
    %s352 = scalar_lea.sflag [#allocation3], 1
    %353 = vsyncpa %s352, 1
    %354 = vsyncpa [#allocation6], 1
    %355 = vsyncpa [#allocation4], 1
    %s356 = scalar_lea.sflag [#allocation4], 1
    %357 = vsyncpa %s356, 1

</llo_original>
